<compile_context>
chip_gen: v7x
topology: tpu7x:2x2x1
jax: 0.10.0
libtpu: 0.0.40
codegen_flags: <defaults>
</compile_context>

<pallas_src>
import functools

import numpy as np
import jax
import jax.numpy as jnp
from jax.experimental import pallas as pl
from jax.experimental.pallas import tpu as pltpu


def _pool_kernel(x_ref, g_ref, o_ref, *, w, blind):
    """x_ref: (B, H*W) block; g_ref: (H*W, Hp*Wp) 0/1 selector; o_ref: (B, Hp*Wp)."""
    x = x_ref[...]
    b, l = x.shape

    if blind:
        # shifted[h, :] = x[h-1, :] (h >= 1), shifted[0, :] = 0, flattened over (h, w)
        y = pltpu.roll(x, shift=w, axis=1)
        lane = jax.lax.broadcasted_iota(jnp.int32, (b, l), 1)
        y = jnp.where(lane < w, jnp.zeros_like(y), y)
    else:
        y = x

    # Vertical pair max:   t[k] = max(y[k], y[k + w])   (valid where row is even)
    t = jnp.maximum(y, pltpu.roll(y, shift=l - w, axis=1))
    # Horizontal pair max: s[k] = max(t[k], t[k + 1])   (valid where column is even)
    s = jnp.maximum(t, pltpu.roll(t, shift=l - 1, axis=1))

    # s[2*i*w + 2*j] now holds the 2x2-window max for output (i, j). Gather those
    # positions into a dense (B, Hp*Wp) tile with a 0/1 selection matmul. The f32
    # values are split into three bf16 components so the bf16 MXU matmuls (with
    # f32 accumulation) reconstruct them exactly (<= 1 ulp).
    g = g_ref[...]
    s32 = s.astype(jnp.float32)
    h1 = s32.astype(jnp.bfloat16)
    r1 = s32 - h1.astype(jnp.float32)
    h2 = r1.astype(jnp.bfloat16)
    h3 = (r1 - h2.astype(jnp.float32)).astype(jnp.bfloat16)
    out = (jnp.dot(h1, g, preferred_element_type=jnp.float32)
           + jnp.dot(h2, g, preferred_element_type=jnp.float32)
           + jnp.dot(h3, g, preferred_element_type=jnp.float32))
    o_ref[...] = out.astype(o_ref.dtype)


def _selection_matrix(h, w):
    """(H*W, Hp*Wp) 0/1 matrix: column (i*Wp + j) selects flat index 2*i*W + 2*j."""
    hp, wp = h // 2, w // 2
    l, p = h * w, hp * wp
    ii, jj = np.meshgrid(np.arange(hp), np.arange(wp), indexing="ij")
    rows = (2 * ii * w + 2 * jj).reshape(-1)
    g = np.zeros((l, p), np.float32)
    g[rows, np.arange(p)] = 1.0
    return jnp.asarray(g, dtype=jnp.bfloat16)   # 0/1 exactly representable


def _pick_block_rows(nc, bytes_per_row, sublane_mult):
    """Slices per block: ~2 MiB blocks, (8,128)-legal leading dim, and >= 2 grid
    steps when possible so v7x's two TensorCores both get work."""
    target = 2 * 1024 * 1024
    b = max(1, min(nc, target // max(1, bytes_per_row)))
    if nc >= 2:
        b = min(b, -(-nc // 2))
    if b < nc and b % sublane_mult != 0:
        b = (b // sublane_mult) * sublane_mult
        if b == 0:
            b = nc if nc < sublane_mult else sublane_mult
    return int(b)


def pool(x, blind=True):
    """Forward pass of the PyTorch `Pool` module. x: (N, C, H, W) float array."""
    n, c, h, w = x.shape
    hp, wp = h // 2, w // 2
    nc, l, p = n * c, h * w, hp * wp

    xf = x.reshape(nc, l)                       # free: NCHW is contiguous
    g = _selection_matrix(h, w)                 # resident selector (constant block)
    itemsize = jnp.dtype(x.dtype).itemsize
    sublane_mult = 8 * max(1, 4 // max(1, itemsize))
    b = _pick_block_rows(nc, l * itemsize, sublane_mult)
    grid = (pl.cdiv(nc, b),)

    kernel = functools.partial(_pool_kernel, w=w, blind=blind)

    out = pl.pallas_call(
        kernel,
        out_shape=jax.ShapeDtypeStruct((nc, p), x.dtype),
        grid_spec=pltpu.PrefetchScalarGridSpec(
            num_scalar_prefetch=0,
            grid=grid,
            in_specs=[
                pl.BlockSpec((b, l), lambda i: (i, 0)),
                pl.BlockSpec((l, p), lambda i: (0, 0)),   # selector: fetched once
            ],
            out_specs=pl.BlockSpec((b, p), lambda i: (i, 0)),
        ),
        compiler_params=pltpu.CompilerParams(
            dimension_semantics=("parallel",),
            vmem_limit_bytes=48 * 1024 * 1024,
        ),
    )(xf, g)

    return out.reshape(n, c, hp, wp)


if __name__ == "__main__":
    key = jax.random.PRNGKey(0)
    x = jax.random.normal(key, (2, 4, 16, 16), dtype=jnp.float32)

    y = jax.block_until_ready(pool(x, blind=True))

    # Pure-JAX reference: zero-pad one row on top, drop the last row, 2x2 max pool.
    n, c, h, w = x.shape
    xs = jnp.pad(x, ((0, 0), (0, 0), (1, 0), (0, 0)))[:, :, :h, :]
    ref = jnp.max(xs.reshape(n, c, h // 2, 2, w // 2, 2), axis=(3, 5))

    assert y.shape == (n, c, h // 2, w // 2), (y.shape,)
    assert y.dtype == x.dtype, (y.dtype, x.dtype)
    assert jnp.allclose(y, ref, rtol=1e-5, atol=1e-6), "mismatch vs reference (blind=True)"

    # Also check the non-blind path (plain 2x2 max pool).
    y2 = jax.block_until_ready(pool(x, blind=False))
    ref2 = jnp.max(x.reshape(n, c, h // 2, 2, w // 2, 2), axis=(3, 5))
    assert jnp.allclose(y2, ref2, rtol=1e-5, atol=1e-6), "mismatch vs reference (blind=False)"

    print("KERNEL_OK")
</pallas_src>

<mosaic_0001>
module attributes {stable_mosaic.version = 11 : i64} {
  func.func @_pool_kernel(%arg0: i32, %arg1: memref<8x256xf32, #tpu.memory_space<vmem>>, %arg2: memref<256x64xbf16, #tpu.memory_space<vmem>>, %arg3: memref<8x64xf32, #tpu.memory_space<vmem>>) attributes {dimension_semantics = [#tpu.dimension_semantics<parallel>], iteration_bounds = array<i64: 1>, scalar_prefetch = 0 : i64, scratch_operands = 0 : i64, tpu.core_type = #tpu.core_type<tc>, window_params = [{transform_indices = @transform_0, window_bounds = array<i64: 8, 256>}, {pipeline_mode = #tpu.pipeline_mode<synchronous>, transform_indices = @transform_1, window_bounds = array<i64: 256, 64>}, {transform_indices = @transform_2, window_bounds = array<i64: 8, 64>}]} {
    %c0 = arith.constant 0 : index
    %c0_0 = arith.constant 0 : index
    %0 = vector.load %arg1[%c0, %c0_0] : memref<8x256xf32, #tpu.memory_space<vmem>>, vector<8x256xf32>
    %c16_i32 = arith.constant 16 : i32
    %1 = tpu.dynamic_rotate %0 by %c16_i32 dim 1 : vector<8x256xf32>, i32 -> vector<8x256xf32>
    %2 = tpu.iota {dimensions = array<i32: 1>} : vector<8x256xi32>
    %c16_i32_1 = arith.constant 16 : i32
    %3 = vector.broadcast %c16_i32_1 : i32 to vector<8x256xi32>
    %4 = arith.cmpi slt, %2, %3 : vector<8x256xi32>
    %cst = arith.constant 0.000000e+00 : f32
    %5 = vector.broadcast %cst : f32 to vector<8x256xf32>
    %6 = arith.select %4, %5, %1 : vector<8x256xi1>, vector<8x256xf32>
    %c240_i32 = arith.constant 240 : i32
    %7 = tpu.dynamic_rotate %6 by %c240_i32 dim 1 : vector<8x256xf32>, i32 -> vector<8x256xf32>
    %8 = arith.maximumf %6, %7 : vector<8x256xf32>
    %c255_i32 = arith.constant 255 : i32
    %9 = tpu.dynamic_rotate %8 by %c255_i32 dim 1 : vector<8x256xf32>, i32 -> vector<8x256xf32>
    %10 = arith.maximumf %8, %9 : vector<8x256xf32>
    %c0_2 = arith.constant 0 : index
    %c0_3 = arith.constant 0 : index
    %11 = vector.load %arg2[%c0_2, %c0_3] : memref<256x64xbf16, #tpu.memory_space<vmem>>, vector<256x64xbf16>
    %12 = arith.truncf %10 : vector<8x256xf32> to vector<8x256xbf16>
    %13 = arith.extf %12 : vector<8x256xbf16> to vector<8x256xf32>
    %14 = arith.subf %10, %13 : vector<8x256xf32>
    %15 = arith.truncf %14 : vector<8x256xf32> to vector<8x256xbf16>
    %16 = arith.extf %15 : vector<8x256xbf16> to vector<8x256xf32>
    %17 = arith.subf %14, %16 : vector<8x256xf32>
    %18 = arith.truncf %17 : vector<8x256xf32> to vector<8x256xbf16>
    %cst_4 = arith.constant dense<0.000000e+00> : vector<8x64xf32>
    %19 = tpu.matmul %12, %11, %cst_4 {dimension_numbers = #tpu.dot_dimension_numbers<[1], [0], [0], [1], [0, 0, 1, 1], [], []>} : vector<8x256xbf16>, vector<256x64xbf16>, vector<8x64xf32> -> vector<8x64xf32>
    %cst_5 = arith.constant dense<0.000000e+00> : vector<8x64xf32>
    %20 = tpu.matmul %15, %11, %cst_5 {dimension_numbers = #tpu.dot_dimension_numbers<[1], [0], [0], [1], [0, 0, 1, 1], [], []>} : vector<8x256xbf16>, vector<256x64xbf16>, vector<8x64xf32> -> vector<8x64xf32>
    %21 = arith.addf %19, %20 : vector<8x64xf32>
    %cst_6 = arith.constant dense<0.000000e+00> : vector<8x64xf32>
    %22 = tpu.matmul %18, %11, %cst_6 {dimension_numbers = #tpu.dot_dimension_numbers<[1], [0], [0], [1], [0, 0, 1, 1], [], []>} : vector<8x256xbf16>, vector<256x64xbf16>, vector<8x64xf32> -> vector<8x64xf32>
    %23 = arith.addf %21, %22 : vector<8x64xf32>
    %c0_7 = arith.constant 0 : index
    %c0_8 = arith.constant 0 : index
    %24 = vector.load %arg3[%c0_7, %c0_8] : memref<8x64xf32, #tpu.memory_space<vmem>>, vector<8x64xf32>
    tpu.vector_store %arg3[%c0_7, %c0_8], %23 {strides = array<i32>} : memref<8x64xf32, #tpu.memory_space<vmem>>, vector<8x64xf32>,
    return
  }
  func.func @transform_0(%arg0: i32) -> (i32, i32) {
    %c0_i32 = arith.constant 0 : i32
    %c0_i32_0 = arith.constant 0 : i32
    return %arg0, %c0_i32 : i32, i32
  }
  func.func @transform_1(%arg0: i32) -> (i32, i32) {
    %c0_i32 = arith.constant 0 : i32
    %c0_i32_0 = arith.constant 0 : i32
    %c0_i32_1 = arith.constant 0 : i32
    return %c0_i32, %c0_i32_0 : i32, i32
  }
  func.func @transform_2(%arg0: i32) -> (i32, i32) {
    %c0_i32 = arith.constant 0 : i32
    %c0_i32_0 = arith.constant 0 : i32
    return %arg0, %c0_i32 : i32, i32
  }
}

</mosaic_0001>

<llo_original>
// kernel: tpu_custom_call.1
$region0: #{tpu_custom_call.1}
  #allocation0 [shape = 'u32[]', space=smem, size = 0x4, offset = 0x4, fixed_abs, tag = 'smem constant byte address 0x4 - core index']
  #allocation1 [shape = 'u32[144,128]{1,0:T(1,128)}', space=vmem, size = 0x12000, scoped, tag = 'internal scratch']
  %s0 = inlined_call_operand.vmem [shape: f32[8,256], index: 0, kind: input, shape index: {}]
  %s1 = inlined_call_operand.vmem [shape: bf16[256,64], index: 1, kind: input, shape index: {}]
  %s2 = inlined_call_operand.hbm [shape: f32[8,64], index: 2, kind: output, shape index: {}]
  %s3 = sld [smem:[#allocation0]]
  $region18: #{tpu_custom_call.1} parent=0
    _
  %s5 = ssub.s32 1, %s3
  %s6 = scalar_select 0, %s5, %s3
  $region1: #{tpu_custom_call.1} parent=0
    #allocation2 [shape = 'u8[4096]{0}', space=vmem, size = 0x1000, scoped, tag = 'output window, operand 0, single buffered']
    #allocation3 [shape = 's32[1]{0}', space=sflag, size = 0x4, scoped, tag = 'scoped memory for tpu_custom_call.1']
    %7 = vsyncpa [#allocation3], 0
    // Predicated region
    $region2: #{tpu_custom_call.1} parent=1 // pred_check
      _
    $region3: #{tpu_custom_call.1} parent=1 // pred_check_branch
      %9 = sbr.rel (0) target = $region5
    $region4: #{tpu_custom_call.1} parent=1 // pred_region
      _
    $region5: #{tpu_custom_call.1} parent=1 // pred_fallthru
      _
    // Predicated region
    $region6: #{tpu_custom_call.1} parent=1 // pred_check
      _
    $region7: #{tpu_custom_call.1} parent=1 // pred_check_branch
      %11 = sbr.rel (0) target = $region9
    $region8: #{tpu_custom_call.1} parent=1 // pred_region
      _
    $region9: #{tpu_custom_call.1} parent=1 // pred_fallthru
      _
    %v13 = vld [vmem:[%s0] sm:$0xff]
    %v14 = vld [vmem:[%s0 + $0x8] sm:$0xff]
    %15 = vrot.lane.b32.xlu0 %v13, 16
    %v16 = vpop.permute.xlu0 %15
    %17 = vrot.lane.b32.xlu0 %v14, 16
    %v18 = vpop.permute.xlu0 %17
    %v19 = vlaneseq
    %v20 = vand.u32 %v19, 127
    %vm21 = vcmp.lt.s32.totalorder %v20, 16
    %v22 = vsel %vm21, %v16, %v18
    %v23 = vsel %vm21, %v18, %v16
    %v24 = vadd.s32 %v20, 128
    %vm25 = vcmp.lt.s32.totalorder %v24, 16
    %v26 = vsel %vm21, 0.0, %v23
    %v27 = vsel %vm25, 0.0, %v22
    %28 = vrot.lane.b32.xlu0 %v26, 112
    %v29 = vpop.permute.xlu0 %28
    %30 = vrot.lane.b32.xlu0 %v27, 112
    %v31 = vpop.permute.xlu0 %30
    %vm32 = vcmp.lt.s32.totalorder %v20, 112
    %v33 = vsel %vm32, %v29, %v31
    %v34 = vsel %vm32, %v31, %v29
    %v35 = vmax.f32 %v26, %v33
    %v36 = vmax.f32 %v27, %v34
    %37 = vrot.lane.b32.xlu0 %v35, 127
    %v38 = vpop.permute.xlu0 %37
    %39 = vrot.lane.b32.xlu0 %v36, 127
    %v40 = vpop.permute.xlu0 %39
    %vm41 = vcmp.lt.s32.totalorder %v20, 127
    %v42 = vsel %vm41, %v38, %v40
    %v43 = vsel %vm41, %v40, %v38
    %v44 = vmax.f32 %v35, %v42
    %v45 = vmax.f32 %v36, %v43
    %v46 = vld [vmem:[%s1] sm:$0xf]
    %v47 = vld [vmem:[%s1 + $0x4] sm:$0xf]
    %v48 = vld [vmem:[%s1 + $0x8] sm:$0xf]
    %v49 = vld [vmem:[%s1 + $0xc] sm:$0xf]
    %v50 = vld [vmem:[%s1 + $0x10] sm:$0xf]
    %v51 = vld [vmem:[%s1 + $0x14] sm:$0xf]
    %v52 = vld [vmem:[%s1 + $0x18] sm:$0xf]
    %v53 = vld [vmem:[%s1 + $0x1c] sm:$0xf]
    %v54 = vld [vmem:[%s1 + $0x20] sm:$0xf]
    %v55 = vld [vmem:[%s1 + $0x24] sm:$0xf]
    %v56 = vld [vmem:[%s1 + $0x28] sm:$0xf]
    %v57 = vld [vmem:[%s1 + $0x2c] sm:$0xf]
    %v58 = vld [vmem:[%s1 + $0x30] sm:$0xf]
    %v59 = vld [vmem:[%s1 + $0x34] sm:$0xf]
    %v60 = vld [vmem:[%s1 + $0x38] sm:$0xf]
    %v61 = vld [vmem:[%s1 + $0x3c] sm:$0xf]
    %v62 = vld [vmem:[%s1 + $0x40] sm:$0xf]
    %v63 = vld [vmem:[%s1 + $0x44] sm:$0xf]
    %v64 = vld [vmem:[%s1 + $0x48] sm:$0xf]
    %v65 = vld [vmem:[%s1 + $0x4c] sm:$0xf]
    %v66 = vld [vmem:[%s1 + $0x50] sm:$0xf]
    %v67 = vld [vmem:[%s1 + $0x54] sm:$0xf]
    %v68 = vld [vmem:[%s1 + $0x58] sm:$0xf]
    %v69 = vld [vmem:[%s1 + $0x5c] sm:$0xf]
    %v70 = vld [vmem:[%s1 + $0x60] sm:$0xf]
    %v71 = vld [vmem:[%s1 + $0x64] sm:$0xf]
    %v72 = vld [vmem:[%s1 + $0x68] sm:$0xf]
    %v73 = vld [vmem:[%s1 + $0x6c] sm:$0xf]
    %v74 = vld [vmem:[%s1 + $0x70] sm:$0xf]
    %v75 = vld [vmem:[%s1 + $0x74] sm:$0xf]
    %v76 = vld [vmem:[%s1 + $0x78] sm:$0xf]
    %v77 = vld [vmem:[%s1 + $0x7c] sm:$0xf]
    %v78 = vpack.c.bf16 %v44, %v44
    %v79 = vpack.c.bf16 %v45, %v45
    %v80 = vunpack.c.l.bf16 %v78
    %v81 = vunpack.c.l.bf16 %v79
    %v82 = vsub.f32 %v44, %v80
    %v83 = vsub.f32 %v45, %v81
    %v84 = vpack.c.bf16 %v82, %v82
    %v85 = vpack.c.bf16 %v83, %v83
    %v86 = vunpack.c.l.bf16 %v84
    %v87 = vunpack.c.l.bf16 %v85
    %v88 = vsub.f32 %v82, %v86
    %v89 = vsub.f32 %v83, %v87
    %v90 = vpack.c.bf16 %v88, %v88
    %v91 = vpack.c.bf16 %v89, %v89
    %v124 = vunpack.c.l.b16 %v46
    %v125 = vunpack.c.l.b16 %v47
    %v126 = vunpack.c.l.b16 %v48
    %v127 = vunpack.c.l.b16 %v49
    %v128 = vunpack.c.l.b16 %v50
    %v129 = vunpack.c.l.b16 %v51
    %v130 = vunpack.c.l.b16 %v52
    %v131 = vunpack.c.l.b16 %v53
    %v132 = vunpack.c.l.b16 %v54
    %v133 = vunpack.c.l.b16 %v55
    %v134 = vunpack.c.l.b16 %v56
    %v135 = vunpack.c.l.b16 %v57
    %v136 = vunpack.c.l.b16 %v58
    %v137 = vunpack.c.l.b16 %v59
    %v138 = vunpack.c.l.b16 %v60
    %v139 = vunpack.c.l.b16 %v61
    %v140 = vunpack.c.l.b16 %v62
    %v141 = vunpack.c.l.b16 %v63
    %v142 = vunpack.c.l.b16 %v64
    %v143 = vunpack.c.l.b16 %v65
    %v144 = vunpack.c.l.b16 %v66
    %v145 = vunpack.c.l.b16 %v67
    %v146 = vunpack.c.l.b16 %v68
    %v147 = vunpack.c.l.b16 %v69
    %v148 = vunpack.c.l.b16 %v70
    %v149 = vunpack.c.l.b16 %v71
    %v150 = vunpack.c.l.b16 %v72
    %v151 = vunpack.c.l.b16 %v73
    %v152 = vunpack.c.l.b16 %v74
    %v153 = vunpack.c.l.b16 %v75
    %v154 = vunpack.c.l.b16 %v76
    %v155 = vunpack.c.l.b16 %v77
    %v156 = vpack.c.b16 %v125, %v124
    %v157 = vpack.c.b16 %v127, %v126
    %v158 = vpack.c.b16 %v129, %v128
    %v159 = vpack.c.b16 %v131, %v130
    %v160 = vpack.c.b16 %v133, %v132
    %v161 = vpack.c.b16 %v135, %v134
    %v162 = vpack.c.b16 %v137, %v136
    %v163 = vpack.c.b16 %v139, %v138
    %v164 = vpack.c.b16 %v141, %v140
    %v165 = vpack.c.b16 %v143, %v142
    %v166 = vpack.c.b16 %v145, %v144
    %v167 = vpack.c.b16 %v147, %v146
    %v168 = vpack.c.b16 %v149, %v148
    %v169 = vpack.c.b16 %v151, %v150
    %v170 = vpack.c.b16 %v153, %v152
    %v171 = vpack.c.b16 %v155, %v154
    %188 = vmatprep.subr.bf16.mxu0 0
    %189 = vmatpush1.bf16.msra.mxu0 %v156
    %190 = vmatprep.subr.bf16.mxu0 0
    %191 = vmatpush1.bf16.msra.mxu0 %v157
    %192 = vmatprep.subr.bf16.mxu0 0
    %193 = vmatpush1.bf16.msra.mxu0 %v158
    %194 = vmatprep.subr.bf16.mxu0 0
    %195 = vmatpush1.bf16.msra.mxu0 %v159
    %196 = vmatprep.subr.bf16.mxu0 0
    %197 = vmatpush1.bf16.msra.mxu0 %v160
    %198 = vmatprep.subr.bf16.mxu0 0
    %199 = vmatpush1.bf16.msra.mxu0 %v161
    %200 = vmatprep.subr.bf16.mxu0 0
    %201 = vmatpush1.bf16.msra.mxu0 %v162
    %202 = vmatprep.subr.bf16.mxu0 0
    %203 = vmatpush1.bf16.msra.mxu0 %v163
    %204 = vmatprep.subr.bf16.mxu0 0
    %205 = vmatpush1.bf16.msra.mxu0 %v164
    %206 = vmatprep.subr.bf16.mxu0 0
    %207 = vmatpush1.bf16.msra.mxu0 %v165
    %208 = vmatprep.subr.bf16.mxu0 0
    %209 = vmatpush1.bf16.msra.mxu0 %v166
    %210 = vmatprep.subr.bf16.mxu0 0
    %211 = vmatpush1.bf16.msra.mxu0 %v167
    %212 = vmatprep.subr.bf16.mxu0 0
    %213 = vmatpush1.bf16.msra.mxu0 %v168
    %214 = vmatprep.subr.bf16.mxu0 0
    %215 = vmatpush1.bf16.msra.mxu0 %v169
    %216 = vmatprep.subr.bf16.mxu0 0
    %217 = vmatpush1.bf16.msra.mxu0 %v170
    %218 = vmatprep.subr.bf16.mxu0 0
    %219 = vmatpush1.bf16.msra.mxu0 %v171
    %220 = vmatprep.mubr.bf16.mxu0 %v85
    %221 = vmatmul.mubr.bf16.gmra.mrb[0].mxu0 %v84
    %v222 = vpop.f32.mrb[0].mxu0
    %v223 = vadd.f32 0.0, %v222
    %v224 = vpop.f32.mrb[0].mxu0
    %v225 = vpop.f32.mrb[0].mxu0
    %v226 = vpop.f32.mrb[0].mxu0
    %227 = vdwg.mxu0
    %228 = vmatprep.subr.bf16.mxu0 0
    %229 = vmatpush1.bf16.msra.mxu0 %v156
    %230 = vmatprep.subr.bf16.mxu0 0
    %231 = vmatpush1.bf16.msra.mxu0 %v157
    %232 = vmatprep.subr.bf16.mxu0 0
    %233 = vmatpush1.bf16.msra.mxu0 %v158
    %234 = vmatprep.subr.bf16.mxu0 0
    %235 = vmatpush1.bf16.msra.mxu0 %v159
    %236 = vmatprep.subr.bf16.mxu0 0
    %237 = vmatpush1.bf16.msra.mxu0 %v160
    %238 = vmatprep.subr.bf16.mxu0 0
    %239 = vmatpush1.bf16.msra.mxu0 %v161
    %240 = vmatprep.subr.bf16.mxu0 0
    %241 = vmatpush1.bf16.msra.mxu0 %v162
    %242 = vmatprep.subr.bf16.mxu0 0
    %243 = vmatpush1.bf16.msra.mxu0 %v163
    %244 = vmatprep.subr.bf16.mxu0 0
    %245 = vmatpush1.bf16.msra.mxu0 %v164
    %246 = vmatprep.subr.bf16.mxu0 0
    %247 = vmatpush1.bf16.msra.mxu0 %v165
    %248 = vmatprep.subr.bf16.mxu0 0
    %249 = vmatpush1.bf16.msra.mxu0 %v166
    %250 = vmatprep.subr.bf16.mxu0 0
    %251 = vmatpush1.bf16.msra.mxu0 %v167
    %252 = vmatprep.subr.bf16.mxu0 0
    %253 = vmatpush1.bf16.msra.mxu0 %v168
    %254 = vmatprep.subr.bf16.mxu0 0
    %255 = vmatpush1.bf16.msra.mxu0 %v169
    %256 = vmatprep.subr.bf16.mxu0 0
    %257 = vmatpush1.bf16.msra.mxu0 %v170
    %258 = vmatprep.subr.bf16.mxu0 0
    %259 = vmatpush1.bf16.msra.mxu0 %v171
    %260 = vmatprep.mubr.bf16.mxu0 %v79
    %261 = vmatmul.mubr.bf16.gmra.mrb[0].mxu0 %v78
    %v262 = vpop.f32.mrb[0].mxu0
    %v263 = vadd.f32 %v223, %v262
    %v264 = vpop.f32.mrb[0].mxu0
    %v265 = vpop.f32.mrb[0].mxu0
    %v266 = vpop.f32.mrb[0].mxu0
    %267 = vdwg.mxu0
    %268 = vmatprep.subr.bf16.mxu0 0
    %269 = vmatpush1.bf16.msra.mxu0 %v156
    %270 = vmatprep.subr.bf16.mxu0 0
    %271 = vmatpush1.bf16.msra.mxu0 %v157
    %272 = vmatprep.subr.bf16.mxu0 0
    %273 = vmatpush1.bf16.msra.mxu0 %v158
    %274 = vmatprep.subr.bf16.mxu0 0
    %275 = vmatpush1.bf16.msra.mxu0 %v159
    %276 = vmatprep.subr.bf16.mxu0 0
    %277 = vmatpush1.bf16.msra.mxu0 %v160
    %278 = vmatprep.subr.bf16.mxu0 0
    %279 = vmatpush1.bf16.msra.mxu0 %v161
    %280 = vmatprep.subr.bf16.mxu0 0
    %281 = vmatpush1.bf16.msra.mxu0 %v162
    %282 = vmatprep.subr.bf16.mxu0 0
    %283 = vmatpush1.bf16.msra.mxu0 %v163
    %284 = vmatprep.subr.bf16.mxu0 0
    %285 = vmatpush1.bf16.msra.mxu0 %v164
    %286 = vmatprep.subr.bf16.mxu0 0
    %287 = vmatpush1.bf16.msra.mxu0 %v165
    %288 = vmatprep.subr.bf16.mxu0 0
    %289 = vmatpush1.bf16.msra.mxu0 %v166
    %290 = vmatprep.subr.bf16.mxu0 0
    %291 = vmatpush1.bf16.msra.mxu0 %v167
    %292 = vmatprep.subr.bf16.mxu0 0
    %293 = vmatpush1.bf16.msra.mxu0 %v168
    %294 = vmatprep.subr.bf16.mxu0 0
    %295 = vmatpush1.bf16.msra.mxu0 %v169
    %296 = vmatprep.subr.bf16.mxu0 0
    %297 = vmatpush1.bf16.msra.mxu0 %v170
    %298 = vmatprep.subr.bf16.mxu0 0
    %299 = vmatpush1.bf16.msra.mxu0 %v171
    %300 = vmatprep.mubr.bf16.mxu0 %v91
    %301 = vmatmul.mubr.bf16.gmra.mrb[0].mxu0 %v90
    %v302 = vpop.f32.mrb[0].mxu0
    %v303 = vadd.f32 0.0, %v302
    %v304 = vpop.f32.mrb[0].mxu0
    %v305 = vpop.f32.mrb[0].mxu0
    %v306 = vpop.f32.mrb[0].mxu0
    %307 = vdwg.mxu0
    %v308 = vadd.f32 %v263, %v303
    %vm309 = vcmask 523264
    %310 = vst.msk [vmem:[#allocation2] sm:$0xff] %vm309, %v308
    // Predicated region
    $region10: #{tpu_custom_call.1} parent=1 // pred_check
      _
    $region11: #{tpu_custom_call.1} parent=1 // pred_check_branch
      %312 = sbr.rel (0) target = $region13
    $region12: #{tpu_custom_call.1} parent=1 // pred_region
      %s314 = ssub.s32 128, 128
      %315 = vsyncadd [#allocation3], %s314
      %s317 = sshll.u32 [#allocation2], 4
      %s318 = int_to_ptr.vmem [resolvable:$true] %s317
      %320 = dma.vmem_to_hbm [thread:$0]  %s318, 128, %s2, [#allocation3]
    $region13: #{tpu_custom_call.1} parent=1 // pred_fallthru
      _
    // Predicated region
    $region14: #{tpu_custom_call.1} parent=1 // pred_check
      _
    $region15: #{tpu_custom_call.1} parent=1 // pred_check_branch
      %322 = sbr.rel (0) target = $region17
    $region16: #{tpu_custom_call.1} parent=1 // pred_region
      %323 = dma.done [#allocation3], 128
    $region17: #{tpu_custom_call.1} parent=1 // pred_fallthru
      _
    %324 = vsyncpa [#allocation3], 1

</llo_original>
